<compile_context>
chip_gen: v5e
topology: v5e:2x2
jax: 0.10.0
libtpu: 0.0.40
codegen_flags: <defaults>
</compile_context>

<pallas_src>
import functools

import jax
import jax.numpy as jnp
from jax.experimental import pallas as pl
from jax.experimental.pallas import tpu as pltpu

STATE_SPACE = 4
ACTION_SPACE = 2
NUM_SUPPORT = 20
HIDDEN = 256
HEAD_PAD = 128          # fused head output padded to a full lane group
TB_MAX = 4096           # default max batch tile (working set ~<30 MiB)


def _detect_generation():
    """Static TPU-generation detection (5 = v5e-and-older, 6 = v6e, 7 = v7x)."""
    try:
        kind = jax.devices()[0].device_kind.lower()
    except Exception:  # pragma: no cover
        return 6
    for old in ("v2", "v3", "v4", "v5"):
        if old in kind:
            return 5
    if "v7" in kind:
        return 7
    return 6


_GEN = _detect_generation()


def _round_up(x, m):
    return ((x + m - 1) // m) * m


def _quantile_kernel(x_ref, w1_ref, b1_ref, w2_ref, b2_ref, w3_ref, b3_ref,
                     wh_ref, bh_ref, out_ref, *, fc1_mxu, bf16_ew):
    ew_dt = jnp.bfloat16 if bf16_ew else jnp.float32
    x = x_ref[...]                                    # (TB, 4)  f32

    # ---- fc1 + ReLU -------------------------------------------------------
    if fc1_mxu:
        # v6e/v7x: VALU is the binding slot, MXU has slack -> K=4 MXU pass.
        h = jnp.dot(x.astype(jnp.bfloat16),
                    w1_ref[...].astype(jnp.bfloat16),
                    preferred_element_type=jnp.float32)
        h = jnp.maximum(h.astype(ew_dt) + b1_ref[...].astype(ew_dt), 0.0)
    else:
        # v5e: MXU-bound -> keep the K=4 contraction on the VPU (broadcast FMAs).
        w1 = w1_ref[...]                              # (4, 256) f32
        h = b1_ref[...]                               # (1, 256) broadcasts up
        for k in range(STATE_SPACE):
            h = h + x[:, k:k + 1] * w1[k:k + 1, :]
        h = jnp.maximum(h, 0.0)
    h = h.astype(jnp.bfloat16)

    # ---- fc2 + ReLU (bf16 MXU operands, f32 accumulation) -----------------
    h = jnp.dot(h, w2_ref[...], preferred_element_type=jnp.float32)
    h = jnp.maximum(h.astype(ew_dt) + b2_ref[...].astype(ew_dt), 0.0)
    h = h.astype(jnp.bfloat16)

    # ---- fc3 + ReLU --------------------------------------------------------
    h = jnp.dot(h, w3_ref[...], preferred_element_type=jnp.float32)
    h = jnp.maximum(h.astype(ew_dt) + b3_ref[...].astype(ew_dt), 0.0)
    h = h.astype(jnp.bfloat16)

    # ---- fused, lane-padded action heads: (TB, 256) @ (256, 128) -----------
    out = jnp.dot(h, wh_ref[...], preferred_element_type=jnp.float32)
    out = out.astype(ew_dt) + bh_ref[...].astype(ew_dt)
    out_ref[...] = out.astype(out_ref.dtype)


def _choose_tiling(batch, tb_max, generation):
    """Pick (tile_rows, padded_batch).  On v7x force >= 2 balanced grid steps
    (both TensorCores) whenever the batch is non-trivial."""
    n_cores = 2 if generation >= 7 else 1
    if n_cores == 1 or batch <= 8:
        if batch <= tb_max:
            return batch, batch            # one full-extent block, no padding
        tb = tb_max
        return tb, _round_up(batch, tb)
    per_core = pl.cdiv(batch, n_cores)
    tb = min(tb_max, max(8, _round_up(per_core, 8)))
    return tb, _round_up(batch, tb)


def _vmem_limit_bytes(tb, out_bytes):
    """Scoped-VMEM budget: double-buffered x (lane-pads 4->128) and output,
    single weight set, plus generous headroom for f32/bf16 intermediates."""
    weights = (STATE_SPACE * HIDDEN * 4 + 3 * HIDDEN * 4
               + 2 * HIDDEN * HIDDEN * 2 + HIDDEN * HEAD_PAD * 2 + HEAD_PAD * 4)
    x_bufs = 2 * tb * 128 * 4
    out_bufs = 2 * tb * HEAD_PAD * out_bytes
    interm = 2 * tb * HIDDEN * (4 + 2 + 4)
    est = 2 * weights + x_bufs + out_bufs + interm + (8 << 20)
    return int(min(max(est, 32 << 20), 56 << 20))   # stay under v7x's 64 MiB


@functools.partial(jax.jit, static_argnames=("action_space", "num_support",
                                              "tb_max", "generation"))
def quantile_forward(x, params, *, action_space=ACTION_SPACE,
                     num_support=NUM_SUPPORT, tb_max=TB_MAX, generation=None):
    """Runs the full MLP in one batch-tiled Pallas call; returns a list of
    per-action quantile tensors, each (B, num_support) in f32, matching the
    PyTorch module's list output."""
    if generation is None:
        generation = _GEN
    w1, b1, w2, b2, w3, b3, wh, bh = params
    batch = x.shape[0]
    out_pad = wh.shape[1]                              # 128 (lane-padded head)

    fc1_mxu = generation >= 6
    bf16_ew = generation >= 6
    out_dtype = jnp.bfloat16 if generation >= 6 else jnp.float32
    out_bytes = 2 if out_dtype == jnp.bfloat16 else 4

    tb, padded = _choose_tiling(batch, tb_max, generation)
    if padded != batch:
        x = jnp.pad(x, ((0, padded - batch), (0, 0)))
    grid = (padded // tb,)

    flops = 2 * padded * (STATE_SPACE * HIDDEN
                          + HIDDEN * HIDDEN * 2
                          + HIDDEN * out_pad)
    bytes_accessed = (padded * STATE_SPACE * 4 + padded * out_pad * out_bytes
                      + w1.size * 4 + b1.size * 4
                      + w2.size * 2 + b2.size * 4
                      + w3.size * 2 + b3.size * 4
                      + wh.size * 2 + bh.size * 4)

    kernel = functools.partial(_quantile_kernel,
                               fc1_mxu=fc1_mxu, bf16_ew=bf16_ew)

    fused_padded = pl.pallas_call(
        kernel,
        out_shape=jax.ShapeDtypeStruct((padded, out_pad), out_dtype),
        grid=grid,
        in_specs=[
            pl.BlockSpec((tb, STATE_SPACE), lambda i: (i, 0)),   # x (tiled)
            pl.BlockSpec(w1.shape, lambda i: (0, 0)),            # weights /
            pl.BlockSpec(b1.shape, lambda i: (0, 0)),            # biases stay
            pl.BlockSpec(w2.shape, lambda i: (0, 0)),            # VMEM-resident
            pl.BlockSpec(b2.shape, lambda i: (0, 0)),            # (constant
            pl.BlockSpec(w3.shape, lambda i: (0, 0)),            #  block idx ->
            pl.BlockSpec(b3.shape, lambda i: (0, 0)),            #  DMA once)
            pl.BlockSpec(wh.shape, lambda i: (0, 0)),
            pl.BlockSpec(bh.shape, lambda i: (0, 0)),
        ],
        out_specs=pl.BlockSpec((tb, out_pad), lambda i: (i, 0)),
        compiler_params=pltpu.CompilerParams(
            dimension_semantics=("parallel",),
            vmem_limit_bytes=_vmem_limit_bytes(tb, out_bytes)),
        cost_estimate=pl.CostEstimate(flops=flops, transcendentals=0,
                                      bytes_accessed=bytes_accessed),
    )(x, w1, b1, w2, b2, w3, b3, wh, bh)

    # Cold glue: drop batch/head padding, upcast, split per action.
    fused = fused_padded[:batch, :action_space * num_support].astype(jnp.float32)
    return [fused[:, i * num_support:(i + 1) * num_support]
            for i in range(action_space)]


def init_params(key):
    """Deterministic init mimicking nn.Linear default (uniform +/- 1/sqrt(fan_in)).
    Weights are stored [in, out]; fc2/fc3/heads kept in bf16 for the MXU,
    fc1 and all biases stay f32 (biases are cast in-kernel when needed)."""
    def linear(key, fan_in, fan_out, w_dtype=jnp.float32):
        kw, kb = jax.random.split(key)
        bound = 1.0 / jnp.sqrt(fan_in)
        w = jax.random.uniform(kw, (fan_in, fan_out), jnp.float32, -bound, bound)
        b = jax.random.uniform(kb, (1, fan_out), jnp.float32, -bound, bound)
        return w.astype(w_dtype), b

    k1, k2, k3, *khs = jax.random.split(key, 3 + ACTION_SPACE)
    w1, b1 = linear(k1, STATE_SPACE, HIDDEN)                       # f32
    w2, b2 = linear(k2, HIDDEN, HIDDEN, jnp.bfloat16)
    w3, b3 = linear(k3, HIDDEN, HIDDEN, jnp.bfloat16)
    head_ws, head_bs = [], []
    for kh in khs:
        w, b = linear(kh, HIDDEN, NUM_SUPPORT, jnp.bfloat16)
        head_ws.append(w)
        head_bs.append(b)
    wh = jnp.concatenate(head_ws, axis=1)           # [256, action_space*20]
    bh = jnp.concatenate(head_bs, axis=1)           # [1,   action_space*20]
    pad = HEAD_PAD - wh.shape[1]
    wh = jnp.pad(wh, ((0, 0), (0, pad)))            # zero cols -> exact zeros
    bh = jnp.pad(bh, ((0, 0), (0, pad)))
    return (w1, b1, w2, b2, w3, b3, wh, bh)


def reference_forward(x, params, generation):
    """Pure-JAX reference mirroring the generation-specialized kernel math."""
    w1, b1, w2, b2, w3, b3, wh, bh = params
    bf = jnp.bfloat16
    if generation >= 6:
        def layer(h, w, b):
            y = jnp.dot(h.astype(bf), w.astype(bf),
                        preferred_element_type=jnp.float32)
            return jnp.maximum(y.astype(bf) + b.astype(bf), 0.0)
        h = layer(x, w1, b1)
        h = layer(h, w2, b2)
        h = layer(h, w3, b3)
        fused = (jnp.dot(h.astype(bf), wh.astype(bf),
                         preferred_element_type=jnp.float32).astype(bf)
                 + bh.astype(bf)).astype(jnp.float32)
    else:
        h = jnp.maximum(x @ w1 + b1, 0.0)
        h = jnp.maximum(jnp.dot(h.astype(bf), w2,
                                preferred_element_type=jnp.float32) + b2, 0.0)
        h = jnp.maximum(jnp.dot(h.astype(bf), w3,
                                preferred_element_type=jnp.float32) + b3, 0.0)
        fused = jnp.dot(h.astype(bf), wh,
                        preferred_element_type=jnp.float32) + bh
    fused = fused[:, :ACTION_SPACE * NUM_SUPPORT]
    return [fused[:, i * NUM_SUPPORT:(i + 1) * NUM_SUPPORT]
            for i in range(ACTION_SPACE)]


def _check(out, ref, batch):
    for o, r in zip(out, ref):
        assert o.shape == (batch, NUM_SUPPORT), o.shape
        assert jnp.allclose(o, r, atol=1e-2, rtol=1e-2)


if __name__ == "__main__":
    key = jax.random.PRNGKey(0)
    kx, kp, kx2, kx3 = jax.random.split(key, 4)
    params = init_params(kp)
    gen = _GEN

    # Small-batch path (single full-extent block).
    batch = 2
    x = jax.random.normal(kx, (batch, STATE_SPACE), dtype=jnp.float32)
    out = jax.block_until_ready(quantile_forward(x, params))
    _check(out, reference_forward(x, params, gen), batch)

    # Multi-tile grid path (batch padded to a multiple of the tile).
    batch2 = 20
    x2 = jax.random.normal(kx2, (batch2, STATE_SPACE), dtype=jnp.float32)
    out2 = jax.block_until_ready(quantile_forward(x2, params, tb_max=8))
    _check(out2, reference_forward(x2, params, gen), batch2)

    # Medium batch with default tiling (exercises the v7x 2-step split and the
    # single-block path on v5e/v6e).
    batch3 = 300
    x3 = jax.random.normal(kx3, (batch3, STATE_SPACE), dtype=jnp.float32)
    out3 = jax.block_until_ready(quantile_forward(x3, params))
    _check(out3, reference_forward(x3, params, gen), batch3)

    print("KERNEL_OK")
</pallas_src>

<mosaic_0001>
module attributes {stable_mosaic.version = 11 : i64} {
  func.func @_quantile_kernel(%arg0: i32, %arg1: memref<2x4xf32, #tpu.memory_space<vmem>>, %arg2: memref<4x256xf32, #tpu.memory_space<vmem>>, %arg3: memref<1x256xf32, #tpu.memory_space<vmem>>, %arg4: memref<256x256xbf16, #tpu.memory_space<vmem>>, %arg5: memref<1x256xf32, #tpu.memory_space<vmem>>, %arg6: memref<256x256xbf16, #tpu.memory_space<vmem>>, %arg7: memref<1x256xf32, #tpu.memory_space<vmem>>, %arg8: memref<256x128xbf16, #tpu.memory_space<vmem>>, %arg9: memref<1x128xf32, #tpu.memory_space<vmem>>, %arg10: memref<2x128xbf16, #tpu.memory_space<vmem>>) attributes {dimension_semantics = [#tpu.dimension_semantics<parallel>], iteration_bounds = array<i64: 1>, scalar_prefetch = 0 : i64, scratch_operands = 0 : i64, tpu.core_type = #tpu.core_type<tc>, window_params = [{transform_indices = @transform_0, window_bounds = array<i64: 2, 4>}, {pipeline_mode = #tpu.pipeline_mode<synchronous>, transform_indices = @transform_1, window_bounds = array<i64: 4, 256>}, {pipeline_mode = #tpu.pipeline_mode<synchronous>, transform_indices = @transform_2, window_bounds = array<i64: 1, 256>}, {pipeline_mode = #tpu.pipeline_mode<synchronous>, transform_indices = @transform_3, window_bounds = array<i64: 256, 256>}, {pipeline_mode = #tpu.pipeline_mode<synchronous>, transform_indices = @transform_4, window_bounds = array<i64: 1, 256>}, {pipeline_mode = #tpu.pipeline_mode<synchronous>, transform_indices = @transform_5, window_bounds = array<i64: 256, 256>}, {pipeline_mode = #tpu.pipeline_mode<synchronous>, transform_indices = @transform_6, window_bounds = array<i64: 1, 256>}, {pipeline_mode = #tpu.pipeline_mode<synchronous>, transform_indices = @transform_7, window_bounds = array<i64: 256, 128>}, {pipeline_mode = #tpu.pipeline_mode<synchronous>, transform_indices = @transform_8, window_bounds = array<i64: 1, 128>}, {transform_indices = @transform_9, window_bounds = array<i64: 2, 128>}]} {
    %c0 = arith.constant 0 : index
    %c0_0 = arith.constant 0 : index
    %0 = vector.load %arg1[%c0, %c0_0] : memref<2x4xf32, #tpu.memory_space<vmem>>, vector<2x4xf32>
    %1 = arith.truncf %0 : vector<2x4xf32> to vector<2x4xbf16>
    %c0_1 = arith.constant 0 : index
    %c0_2 = arith.constant 0 : index
    %2 = vector.load %arg2[%c0_1, %c0_2] : memref<4x256xf32, #tpu.memory_space<vmem>>, vector<4x256xf32>
    %3 = arith.truncf %2 : vector<4x256xf32> to vector<4x256xbf16>
    %cst = arith.constant dense<0.000000e+00> : vector<2x256xf32>
    %4 = tpu.matmul %1, %3, %cst {dimension_numbers = #tpu.dot_dimension_numbers<[1], [0], [0], [1], [0, 0, 1, 1], [], []>} : vector<2x4xbf16>, vector<4x256xbf16>, vector<2x256xf32> -> vector<2x256xf32>
    %5 = arith.truncf %4 : vector<2x256xf32> to vector<2x256xbf16>
    %c0_3 = arith.constant 0 : index
    %c0_4 = arith.constant 0 : index
    %6 = vector.load %arg3[%c0_3, %c0_4] : memref<1x256xf32, #tpu.memory_space<vmem>>, vector<1x256xf32>
    %7 = arith.truncf %6 : vector<1x256xf32> to vector<1x256xbf16>
    %8 = vector.broadcast %7 : vector<1x256xbf16> to vector<2x256xbf16>
    %9 = arith.addf %5, %8 : vector<2x256xbf16>
    %cst_5 = arith.constant 0.000000e+00 : bf16
    %10 = vector.broadcast %cst_5 : bf16 to vector<2x256xbf16>
    %11 = arith.maximumf %9, %10 : vector<2x256xbf16>
    %c0_6 = arith.constant 0 : index
    %c0_7 = arith.constant 0 : index
    %12 = vector.load %arg4[%c0_6, %c0_7] : memref<256x256xbf16, #tpu.memory_space<vmem>>, vector<256x256xbf16>
    %cst_8 = arith.constant dense<0.000000e+00> : vector<2x256xf32>
    %13 = tpu.matmul %11, %12, %cst_8 {dimension_numbers = #tpu.dot_dimension_numbers<[1], [0], [0], [1], [0, 0, 1, 1], [], []>} : vector<2x256xbf16>, vector<256x256xbf16>, vector<2x256xf32> -> vector<2x256xf32>
    %14 = arith.truncf %13 : vector<2x256xf32> to vector<2x256xbf16>
    %c0_9 = arith.constant 0 : index
    %c0_10 = arith.constant 0 : index
    %15 = vector.load %arg5[%c0_9, %c0_10] : memref<1x256xf32, #tpu.memory_space<vmem>>, vector<1x256xf32>
    %16 = arith.truncf %15 : vector<1x256xf32> to vector<1x256xbf16>
    %17 = vector.broadcast %16 : vector<1x256xbf16> to vector<2x256xbf16>
    %18 = arith.addf %14, %17 : vector<2x256xbf16>
    %cst_11 = arith.constant 0.000000e+00 : bf16
    %19 = vector.broadcast %cst_11 : bf16 to vector<2x256xbf16>
    %20 = arith.maximumf %18, %19 : vector<2x256xbf16>
    %c0_12 = arith.constant 0 : index
    %c0_13 = arith.constant 0 : index
    %21 = vector.load %arg6[%c0_12, %c0_13] : memref<256x256xbf16, #tpu.memory_space<vmem>>, vector<256x256xbf16>
    %cst_14 = arith.constant dense<0.000000e+00> : vector<2x256xf32>
    %22 = tpu.matmul %20, %21, %cst_14 {dimension_numbers = #tpu.dot_dimension_numbers<[1], [0], [0], [1], [0, 0, 1, 1], [], []>} : vector<2x256xbf16>, vector<256x256xbf16>, vector<2x256xf32> -> vector<2x256xf32>
    %23 = arith.truncf %22 : vector<2x256xf32> to vector<2x256xbf16>
    %c0_15 = arith.constant 0 : index
    %c0_16 = arith.constant 0 : index
    %24 = vector.load %arg7[%c0_15, %c0_16] : memref<1x256xf32, #tpu.memory_space<vmem>>, vector<1x256xf32>
    %25 = arith.truncf %24 : vector<1x256xf32> to vector<1x256xbf16>
    %26 = vector.broadcast %25 : vector<1x256xbf16> to vector<2x256xbf16>
    %27 = arith.addf %23, %26 : vector<2x256xbf16>
    %cst_17 = arith.constant 0.000000e+00 : bf16
    %28 = vector.broadcast %cst_17 : bf16 to vector<2x256xbf16>
    %29 = arith.maximumf %27, %28 : vector<2x256xbf16>
    %c0_18 = arith.constant 0 : index
    %c0_19 = arith.constant 0 : index
    %30 = vector.load %arg8[%c0_18, %c0_19] : memref<256x128xbf16, #tpu.memory_space<vmem>>, vector<256x128xbf16>
    %cst_20 = arith.constant dense<0.000000e+00> : vector<2x128xf32>
    %31 = tpu.matmul %29, %30, %cst_20 {dimension_numbers = #tpu.dot_dimension_numbers<[1], [0], [0], [1], [0, 0, 1, 1], [], []>} : vector<2x256xbf16>, vector<256x128xbf16>, vector<2x128xf32> -> vector<2x128xf32>
    %32 = arith.truncf %31 : vector<2x128xf32> to vector<2x128xbf16>
    %c0_21 = arith.constant 0 : index
    %c0_22 = arith.constant 0 : index
    %33 = vector.load %arg9[%c0_21, %c0_22] : memref<1x128xf32, #tpu.memory_space<vmem>>, vector<1x128xf32>
    %34 = arith.truncf %33 : vector<1x128xf32> to vector<1x128xbf16>
    %35 = vector.broadcast %34 : vector<1x128xbf16> to vector<2x128xbf16>
    %36 = arith.addf %32, %35 : vector<2x128xbf16>
    %c0_23 = arith.constant 0 : index
    %c0_24 = arith.constant 0 : index
    %37 = vector.load %arg10[%c0_23, %c0_24] : memref<2x128xbf16, #tpu.memory_space<vmem>>, vector<2x128xbf16>
    tpu.vector_store %arg10[%c0_23, %c0_24], %36 {strides = array<i32>} : memref<2x128xbf16, #tpu.memory_space<vmem>>, vector<2x128xbf16>,
    return
  }
  func.func @transform_0(%arg0: i32) -> (i32, i32) {
    %c0_i32 = arith.constant 0 : i32
    %c0_i32_0 = arith.constant 0 : i32
    return %arg0, %c0_i32 : i32, i32
  }
  func.func @transform_1(%arg0: i32) -> (i32, i32) {
    %c0_i32 = arith.constant 0 : i32
    %c0_i32_0 = arith.constant 0 : i32
    %c0_i32_1 = arith.constant 0 : i32
    return %c0_i32, %c0_i32_0 : i32, i32
  }
  func.func @transform_2(%arg0: i32) -> (i32, i32) {
    %c0_i32 = arith.constant 0 : i32
    %c0_i32_0 = arith.constant 0 : i32
    %c0_i32_1 = arith.constant 0 : i32
    return %c0_i32, %c0_i32_0 : i32, i32
  }
  func.func @transform_3(%arg0: i32) -> (i32, i32) {
    %c0_i32 = arith.constant 0 : i32
    %c0_i32_0 = arith.constant 0 : i32
    %c0_i32_1 = arith.constant 0 : i32
    return %c0_i32, %c0_i32_0 : i32, i32
  }
  func.func @transform_4(%arg0: i32) -> (i32, i32) {
    %c0_i32 = arith.constant 0 : i32
    %c0_i32_0 = arith.constant 0 : i32
    %c0_i32_1 = arith.constant 0 : i32
    return %c0_i32, %c0_i32_0 : i32, i32
  }
  func.func @transform_5(%arg0: i32) -> (i32, i32) {
    %c0_i32 = arith.constant 0 : i32
    %c0_i32_0 = arith.constant 0 : i32
    %c0_i32_1 = arith.constant 0 : i32
    return %c0_i32, %c0_i32_0 : i32, i32
  }
  func.func @transform_6(%arg0: i32) -> (i32, i32) {
    %c0_i32 = arith.constant 0 : i32
    %c0_i32_0 = arith.constant 0 : i32
    %c0_i32_1 = arith.constant 0 : i32
    return %c0_i32, %c0_i32_0 : i32, i32
  }
  func.func @transform_7(%arg0: i32) -> (i32, i32) {
    %c0_i32 = arith.constant 0 : i32
    %c0_i32_0 = arith.constant 0 : i32
    %c0_i32_1 = arith.constant 0 : i32
    return %c0_i32, %c0_i32_0 : i32, i32
  }
  func.func @transform_8(%arg0: i32) -> (i32, i32) {
    %c0_i32 = arith.constant 0 : i32
    %c0_i32_0 = arith.constant 0 : i32
    %c0_i32_1 = arith.constant 0 : i32
    return %c0_i32, %c0_i32_0 : i32, i32
  }
  func.func @transform_9(%arg0: i32) -> (i32, i32) {
    %c0_i32 = arith.constant 0 : i32
    %c0_i32_0 = arith.constant 0 : i32
    return %arg0, %c0_i32 : i32, i32
  }
}

</mosaic_0001>

<llo_original>
// kernel: quantile_forward.1
$region0: #{quantile_forward.1}
  #allocation0 [shape = 'u32[]', space=smem, size = 0x4, offset = 0x4, fixed_abs, tag = 'smem constant byte address 0x4 - core index']
  #allocation1 [shape = 'u32[72,128]{1,0:T(1,128)}', space=vmem, size = 0x9000, scoped, tag = 'internal scratch']
  %s0 = inlined_call_operand.hbm [shape: f32[2,4], index: 0, kind: input, shape index: {}]
  %s1 = inlined_call_operand.hbm [shape: f32[4,256], index: 1, kind: input, shape index: {}]
  %s2 = inlined_call_operand.hbm [shape: f32[1,256], index: 2, kind: input, shape index: {}]
  %s3 = inlined_call_operand.hbm [shape: bf16[256,256], index: 3, kind: input, shape index: {}]
  %s4 = inlined_call_operand.vmem [shape: f32[1,256], index: 4, kind: input, shape index: {}]
  %s5 = inlined_call_operand.hbm [shape: bf16[256,256], index: 5, kind: input, shape index: {}]
  %s6 = inlined_call_operand.vmem [shape: f32[1,256], index: 6, kind: input, shape index: {}]
  %s7 = inlined_call_operand.hbm [shape: bf16[256,128], index: 7, kind: input, shape index: {}]
  %s8 = inlined_call_operand.vmem [shape: f32[1,128], index: 8, kind: input, shape index: {}]
  %s9 = inlined_call_operand.vmem [shape: bf16[2,128], index: 9, kind: output, shape index: {}]
  %s10 = sld [smem:[#allocation0]]
  $region70: #{quantile_forward.1} parent=0
    _
  %s12 = ssub.s32 1, %s10
  %s13 = scalar_select 0, %s12, %s10
  $region1: #{quantile_forward.1} parent=0
    #allocation2 [shape = 'u8[1024]{0}', space=vmem, size = 0x400, scoped, tag = 'input window, operand 0, single buffered']
    #allocation3 [shape = 's32[1]{0}', space=sflag, size = 0x4, scoped, tag = 'scoped memory for quantile_forward.1']
    #allocation4 [shape = 'u8[4096]{0}', space=vmem, size = 0x1000, scoped, tag = 'input window, operand 1, single buffered']
    #allocation5 [shape = 's32[1]{0}', space=sflag, size = 0x4, scoped, tag = 'scoped memory for quantile_forward.1']
    #allocation6 [shape = 'u8[1024]{0}', space=vmem, size = 0x400, scoped, tag = 'input window, operand 2, single buffered']
    #allocation7 [shape = 'u8[131072]{0}', space=vmem, size = 0x20000, scoped, tag = 'input window, operand 3, single buffered']
    #allocation8 [shape = 's32[1]{0}', space=sflag, size = 0x4, scoped, tag = 'scoped memory for quantile_forward.1']
    #allocation9 [shape = 'u8[131072]{0}', space=vmem, size = 0x20000, scoped, tag = 'input window, operand 5, single buffered']
    #allocation10 [shape = 'u8[65536]{0}', space=vmem, size = 0x10000, scoped, tag = 'input window, operand 7, single buffered']
    #allocation11 [shape = 's32[1]{0}', space=sflag, size = 0x4, scoped, tag = 'scoped memory for quantile_forward.1']
    %14 = vsyncpa [#allocation3], 0
    %15 = vsyncpa [#allocation5], 0
    %16 = vsyncpa [#allocation8], 0
    %17 = vsyncpa [#allocation11], 0
    // Predicated region
    $region2: #{quantile_forward.1} parent=1 // pred_check
      _
    $region3: #{quantile_forward.1} parent=1 // pred_check_branch
      %19 = sbr.rel (0) target = $region5
    $region4: #{quantile_forward.1} parent=1 // pred_region
      %21 = vsyncadd [#allocation3], 0
      %s23 = sshll.u32 %s0, 4
      %s24 = int_to_ptr.hbm [resolvable:$true] %s23
      %s25 = sshll.u32 [#allocation2], 4
      %s26 = int_to_ptr.vmem [resolvable:$true] %s25
      %28 = dma.hbm_to_vmem [thread:$0]  %s24, 32, %s26, [#allocation3]
    $region5: #{quantile_forward.1} parent=1 // pred_fallthru
      _
    // Predicated region
    $region6: #{quantile_forward.1} parent=1 // pred_check
      _
    $region7: #{quantile_forward.1} parent=1 // pred_check_branch
      %30 = sbr.rel (0) target = $region9
    $region8: #{quantile_forward.1} parent=1 // pred_region
      %32 = vsyncadd [#allocation5], 0
      %s34 = sshll.u32 %s1, 4
      %s35 = int_to_ptr.hbm [resolvable:$true] %s34
      %s36 = sshll.u32 [#allocation4], 4
      %s37 = int_to_ptr.vmem [resolvable:$true] %s36
      %39 = dma.hbm_to_vmem [thread:$0]  %s35, 128, %s37, [#allocation5]
    $region9: #{quantile_forward.1} parent=1 // pred_fallthru
      _
    // Predicated region
    $region10: #{quantile_forward.1} parent=1 // pred_check
      _
    $region11: #{quantile_forward.1} parent=1 // pred_check_branch
      %41 = sbr.rel (0) target = $region13
    $region12: #{quantile_forward.1} parent=1 // pred_region
      %43 = vsyncadd [#allocation5], 0
      %s45 = sshll.u32 %s2, 4
      %s46 = int_to_ptr.hbm [resolvable:$true] %s45
      %s47 = sshll.u32 [#allocation6], 4
      %s48 = int_to_ptr.vmem [resolvable:$true] %s47
      %50 = dma.hbm_to_vmem [thread:$0]  %s46, 32, %s48, [#allocation5]
    $region13: #{quantile_forward.1} parent=1 // pred_fallthru
      _
    // Predicated region
    $region14: #{quantile_forward.1} parent=1 // pred_check
      _
    $region15: #{quantile_forward.1} parent=1 // pred_check_branch
      %52 = sbr.rel (0) target = $region17
    $region16: #{quantile_forward.1} parent=1 // pred_region
      %54 = vsyncadd [#allocation8], 0
      %s55 = sshll.u32 %s3, 4
      %s56 = int_to_ptr.hbm [resolvable:$true] %s55
      %s57 = sshll.u32 [#allocation7], 4
      %s58 = int_to_ptr.vmem [resolvable:$true] %s57
      %63 = dma.hbm_to_vmem [thread:$0]  %s56, 4096, %s58, [#allocation8], 128, 128, 8
    $region17: #{quantile_forward.1} parent=1 // pred_fallthru
      _
    // Predicated region
    $region18: #{quantile_forward.1} parent=1 // pred_check
      _
    $region19: #{quantile_forward.1} parent=1 // pred_check_branch
      %65 = sbr.rel (0) target = $region21
    $region20: #{quantile_forward.1} parent=1 // pred_region
      _
    $region21: #{quantile_forward.1} parent=1 // pred_fallthru
      _
    // Predicated region
    $region22: #{quantile_forward.1} parent=1 // pred_check
      _
    $region23: #{quantile_forward.1} parent=1 // pred_check_branch
      %67 = sbr.rel (0) target = $region25
    $region24: #{quantile_forward.1} parent=1 // pred_region
      %69 = vsyncadd [#allocation8], 0
      %s70 = sshll.u32 %s5, 4
      %s71 = int_to_ptr.hbm [resolvable:$true] %s70
      %s72 = sshll.u32 [#allocation9], 4
      %s73 = int_to_ptr.vmem [resolvable:$true] %s72
      %78 = dma.hbm_to_vmem [thread:$0]  %s71, 4096, %s73, [#allocation8], 128, 128, 8
    $region25: #{quantile_forward.1} parent=1 // pred_fallthru
      _
    // Predicated region
    $region26: #{quantile_forward.1} parent=1 // pred_check
      _
    $region27: #{quantile_forward.1} parent=1 // pred_check_branch
      %80 = sbr.rel (0) target = $region29
    $region28: #{quantile_forward.1} parent=1 // pred_region
      _
    $region29: #{quantile_forward.1} parent=1 // pred_fallthru
      _
    // Predicated region
    $region30: #{quantile_forward.1} parent=1 // pred_check
      _
    $region31: #{quantile_forward.1} parent=1 // pred_check_branch
      %82 = sbr.rel (0) target = $region33
    $region32: #{quantile_forward.1} parent=1 // pred_region
      %84 = vsyncadd [#allocation11], 0
      %s85 = sshll.u32 %s7, 4
      %s86 = int_to_ptr.hbm [resolvable:$true] %s85
      %s87 = sshll.u32 [#allocation10], 4
      %s88 = int_to_ptr.vmem [resolvable:$true] %s87
      %93 = dma.hbm_to_vmem [thread:$0]  %s86, 2048, %s88, [#allocation11], 64, 64, 4
    $region33: #{quantile_forward.1} parent=1 // pred_fallthru
      _
    // Predicated region
    $region34: #{quantile_forward.1} parent=1 // pred_check
      _
    $region35: #{quantile_forward.1} parent=1 // pred_check_branch
      %95 = sbr.rel (0) target = $region37
    $region36: #{quantile_forward.1} parent=1 // pred_region
      _
    $region37: #{quantile_forward.1} parent=1 // pred_fallthru
      _
    // Predicated region
    $region38: #{quantile_forward.1} parent=1 // pred_check
      _
    $region39: #{quantile_forward.1} parent=1 // pred_check_branch
      %97 = sbr.rel (0) target = $region41
    $region40: #{quantile_forward.1} parent=1 // pred_region
      %99 = dma.done [#allocation3], 32
    $region41: #{quantile_forward.1} parent=1 // pred_fallthru
      _
    // Predicated region
    $region42: #{quantile_forward.1} parent=1 // pred_check
      _
    $region43: #{quantile_forward.1} parent=1 // pred_check_branch
      %101 = sbr.rel (0) target = $region45
    $region44: #{quantile_forward.1} parent=1 // pred_region
      %103 = dma.done [#allocation5], 128
    $region45: #{quantile_forward.1} parent=1 // pred_fallthru
      _
    // Predicated region
    $region46: #{quantile_forward.1} parent=1 // pred_check
      _
    $region47: #{quantile_forward.1} parent=1 // pred_check_branch
      %105 = sbr.rel (0) target = $region49
    $region48: #{quantile_forward.1} parent=1 // pred_region
      %107 = dma.done [#allocation5], 32
    $region49: #{quantile_forward.1} parent=1 // pred_fallthru
      _
    // Predicated region
    $region50: #{quantile_forward.1} parent=1 // pred_check
      _
    $region51: #{quantile_forward.1} parent=1 // pred_check_branch
      %109 = sbr.rel (0) target = $region53
    $region52: #{quantile_forward.1} parent=1 // pred_region
      %111 = dma.done [#allocation8], 4096
    $region53: #{quantile_forward.1} parent=1 // pred_fallthru
      _
    // Predicated region
    $region54: #{quantile_forward.1} parent=1 // pred_check
      _
    $region55: #{quantile_forward.1} parent=1 // pred_check_branch
      %113 = sbr.rel (0) target = $region57
    $region56: #{quantile_forward.1} parent=1 // pred_region
      %115 = dma.done [#allocation8], 4096
    $region57: #{quantile_forward.1} parent=1 // pred_fallthru
      _
    // Predicated region
    $region58: #{quantile_forward.1} parent=1 // pred_check
      _
    $region59: #{quantile_forward.1} parent=1 // pred_check_branch
      %117 = sbr.rel (0) target = $region61
    $region60: #{quantile_forward.1} parent=1 // pred_region
      %119 = dma.done [#allocation11], 2048
    $region61: #{quantile_forward.1} parent=1 // pred_fallthru
      _
    %v121 = vld [vmem:[#allocation2] sm:$0x3]
    %v122 = vpack.c.bf16 %v121, %v121
    %v123 = vld [vmem:[#allocation4] sm:$0xff]
    %125 = vst [vmem:[#allocation1] ss:$2 sm:$0xff] %v123
    %v126 = vld.sshfl [vmem:[#allocation1] sm:$0xff pattern:$0x75316420]
    %v127 = vld.sshfl [vmem:[#allocation1 + $0x8] sm:$0xff pattern:$0x75316420]
    %v130 = vpack.c.bf16 %v126, %v126
    %v131 = vpack.c.bf16 %v127, %v127
    %vm132 = vcmask 31744
    %v134 = vsel %vm132, %v122, 0
    %vm136 = vcmask 1041408
    %v138 = vsel %vm136, %v130, 0
    %v141 = vsel %vm136, %v131, 0
    %143 = vmatpush.bf16.msra.mxu0 0
    %144 = vmatpush.bf16.msra.mxu0 0
    %145 = vmatpush.bf16.msra.mxu0 0
    %146 = vmatpush.bf16.msra.mxu0 0
    %147 = vmatpush.bf16.msra.mxu0 0
    %148 = vmatpush.bf16.msra.mxu0 0
    %149 = vmatpush.bf16.msra.mxu0 0
    %150 = vmatpush.bf16.msra.mxu0 %v138
    %151 = vmatmul.bf16.gmra.mxu0 %v134
    %v152 = vpop.f32.mrf.mxu0
    %v153 = vadd.f32 0.0, %v152
    %v154 = vpop.f32.mrf.mxu0
    %155 = vdwg.mxu0
    %156 = vmatpush.bf16.msra.mxu0 0
    %157 = vmatpush.bf16.msra.mxu0 0
    %158 = vmatpush.bf16.msra.mxu0 0
    %159 = vmatpush.bf16.msra.mxu0 0
    %160 = vmatpush.bf16.msra.mxu0 0
    %161 = vmatpush.bf16.msra.mxu0 0
    %162 = vmatpush.bf16.msra.mxu0 0
    %163 = vmatpush.bf16.msra.mxu0 %v141
    %164 = vmatmul.bf16.gmra.mxu0 %v134
    %v165 = vpop.f32.mrf.mxu0
    %v166 = vadd.f32 0.0, %v165
    %v167 = vpop.f32.mrf.mxu0
    %168 = vdwg.mxu0
    %v169 = vpack.c.bf16 %v166, %v153
    %v170 = vld [vmem:[#allocation6] sm:$0x3]
    %v172 = vperm.slane %v170, 0
    %v173 = vperm.slane %v170, 1
    %v176 = vpack.c.bf16 %v173, %v172
    %v178 = vunpack.c.l.b16 %v176
    %v179 = vunpack.c.h.b16 %v176
    %v180 = vpack.c.b16 %v178, %v178
    %v181 = vpack.c.b16 %v179, %v179
    %v183 = vpack.i.b16 %v180, %v180
    %v185 = vperm.slane %v183, 0
    %v187 = vpack.i.b16 %v181, %v181
    %v189 = vperm.slane %v187, 0
    %v190 = vunpack.c.l.bf16 %v169
    %v191 = vunpack.c.h.bf16 %v169
    %v192 = vunpack.c.l.bf16 %v185
    %v193 = vunpack.c.l.bf16 %v189
    %v194 = vadd.f32 %v190, %v192
    %v195 = vadd.f32 %v191, %v193
    %v196 = vpack.c.bf16 %v195, %v194
    %v197 = vunpack.c.l.bf16 %v196
    %v198 = vunpack.c.h.bf16 %v196
    %v199 = vmax.f32 %v197, 0.0
    %v200 = vmax.f32 %v198, 0.0
    %v201 = vpack.c.bf16 %v199, %v199
    %v202 = vpack.c.bf16 %v200, %v200
    %v203 = vld [vmem:[#allocation7] sm:$0xff]
    %v204 = vld [vmem:[#allocation7 + $0x8] sm:$0xff]
    %v205 = vld [vmem:[#allocation7 + $0x10] sm:$0xff]
    %v206 = vld [vmem:[#allocation7 + $0x18] sm:$0xff]
    %v207 = vld [vmem:[#allocation7 + $0x20] sm:$0xff]
    %v208 = vld [vmem:[#allocation7 + $0x28] sm:$0xff]
    %v209 = vld [vmem:[#allocation7 + $0x30] sm:$0xff]
    %v210 = vld [vmem:[#allocation7 + $0x38] sm:$0xff]
    %v211 = vld [vmem:[#allocation7 + $0x40] sm:$0xff]
    %v212 = vld [vmem:[#allocation7 + $0x48] sm:$0xff]
    %v213 = vld [vmem:[#allocation7 + $0x50] sm:$0xff]
    %v214 = vld [vmem:[#allocation7 + $0x58] sm:$0xff]
    %v215 = vld [vmem:[#allocation7 + $0x60] sm:$0xff]
    %v216 = vld [vmem:[#allocation7 + $0x68] sm:$0xff]
    %v217 = vld [vmem:[#allocation7 + $0x70] sm:$0xff]
    %v218 = vld [vmem:[#allocation7 + $0x78] sm:$0xff]
    %v219 = vld [vmem:[#allocation7 + $0x80] sm:$0xff]
    %v220 = vld [vmem:[#allocation7 + $0x88] sm:$0xff]
    %v221 = vld [vmem:[#allocation7 + $0x90] sm:$0xff]
    %v222 = vld [vmem:[#allocation7 + $0x98] sm:$0xff]
    %v223 = vld [vmem:[#allocation7 + $0xa0] sm:$0xff]
    %v224 = vld [vmem:[#allocation7 + $0xa8] sm:$0xff]
    %v225 = vld [vmem:[#allocation7 + $0xb0] sm:$0xff]
    %v226 = vld [vmem:[#allocation7 + $0xb8] sm:$0xff]
    %v227 = vld [vmem:[#allocation7 + $0xc0] sm:$0xff]
    %v228 = vld [vmem:[#allocation7 + $0xc8] sm:$0xff]
    %v229 = vld [vmem:[#allocation7 + $0xd0] sm:$0xff]
    %v230 = vld [vmem:[#allocation7 + $0xd8] sm:$0xff]
    %v231 = vld [vmem:[#allocation7 + $0xe0] sm:$0xff]
    %v232 = vld [vmem:[#allocation7 + $0xe8] sm:$0xff]
    %v233 = vld [vmem:[#allocation7 + $0xf0] sm:$0xff]
    %v234 = vld [vmem:[#allocation7 + $0xf8] sm:$0xff]
    %v267 = vunpack.c.l.b16 %v203
    %v268 = vunpack.c.h.b16 %v203
    %v269 = vunpack.c.l.b16 %v204
    %v270 = vunpack.c.h.b16 %v204
    %v271 = vunpack.c.l.b16 %v205
    %v272 = vunpack.c.h.b16 %v205
    %v273 = vunpack.c.l.b16 %v206
    %v274 = vunpack.c.h.b16 %v206
    %v275 = vunpack.c.l.b16 %v207
    %v276 = vunpack.c.h.b16 %v207
    %v277 = vunpack.c.l.b16 %v208
    %v278 = vunpack.c.h.b16 %v208
    %v279 = vunpack.c.l.b16 %v209
    %v280 = vunpack.c.h.b16 %v209
    %v281 = vunpack.c.l.b16 %v210
    %v282 = vunpack.c.h.b16 %v210
    %v283 = vunpack.c.l.b16 %v211
    %v284 = vunpack.c.h.b16 %v211
    %v285 = vunpack.c.l.b16 %v212
    %v286 = vunpack.c.h.b16 %v212
    %v287 = vunpack.c.l.b16 %v213
    %v288 = vunpack.c.h.b16 %v213
    %v289 = vunpack.c.l.b16 %v214
    %v290 = vunpack.c.h.b16 %v214
    %v291 = vunpack.c.l.b16 %v215
    %v292 = vunpack.c.h.b16 %v215
    %v293 = vunpack.c.l.b16 %v216
    %v294 = vunpack.c.h.b16 %v216
    %v295 = vunpack.c.l.b16 %v217
    %v296 = vunpack.c.h.b16 %v217
    %v297 = vunpack.c.l.b16 %v218
    %v298 = vunpack.c.h.b16 %v218
    %v299 = vunpack.c.l.b16 %v219
    %v300 = vunpack.c.h.b16 %v219
    %v301 = vunpack.c.l.b16 %v220
    %v302 = vunpack.c.h.b16 %v220
    %v303 = vunpack.c.l.b16 %v221
    %v304 = vunpack.c.h.b16 %v221
    %v305 = vunpack.c.l.b16 %v222
    %v306 = vunpack.c.h.b16 %v222
    %v307 = vunpack.c.l.b16 %v223
    %v308 = vunpack.c.h.b16 %v223
    %v309 = vunpack.c.l.b16 %v224
    %v310 = vunpack.c.h.b16 %v224
    %v311 = vunpack.c.l.b16 %v225
    %v312 = vunpack.c.h.b16 %v225
    %v313 = vunpack.c.l.b16 %v226
    %v314 = vunpack.c.h.b16 %v226
    %v315 = vunpack.c.l.b16 %v227
    %v316 = vunpack.c.h.b16 %v227
    %v317 = vunpack.c.l.b16 %v228
    %v318 = vunpack.c.h.b16 %v228
    %v319 = vunpack.c.l.b16 %v229
    %v320 = vunpack.c.h.b16 %v229
    %v321 = vunpack.c.l.b16 %v230
    %v322 = vunpack.c.h.b16 %v230
    %v323 = vunpack.c.l.b16 %v231
    %v324 = vunpack.c.h.b16 %v231
    %v325 = vunpack.c.l.b16 %v232
    %v326 = vunpack.c.h.b16 %v232
    %v327 = vunpack.c.l.b16 %v233
    %v328 = vunpack.c.h.b16 %v233
    %v329 = vunpack.c.l.b16 %v234
    %v330 = vunpack.c.h.b16 %v234
    %v331 = vpack.c.b16 %v269, %v267
    %v332 = vpack.c.b16 %v270, %v268
    %v333 = vpack.c.b16 %v273, %v271
    %v334 = vpack.c.b16 %v274, %v272
    %v335 = vpack.c.b16 %v277, %v275
    %v336 = vpack.c.b16 %v278, %v276
    %v337 = vpack.c.b16 %v281, %v279
    %v338 = vpack.c.b16 %v282, %v280
    %v339 = vpack.c.b16 %v285, %v283
    %v340 = vpack.c.b16 %v286, %v284
    %v341 = vpack.c.b16 %v289, %v287
    %v342 = vpack.c.b16 %v290, %v288
    %v343 = vpack.c.b16 %v293, %v291
    %v344 = vpack.c.b16 %v294, %v292
    %v345 = vpack.c.b16 %v297, %v295
    %v346 = vpack.c.b16 %v298, %v296
    %v347 = vpack.c.b16 %v301, %v299
    %v348 = vpack.c.b16 %v302, %v300
    %v349 = vpack.c.b16 %v305, %v303
    %v350 = vpack.c.b16 %v306, %v304
    %v351 = vpack.c.b16 %v309, %v307
    %v352 = vpack.c.b16 %v310, %v308
    %v353 = vpack.c.b16 %v313, %v311
    %v354 = vpack.c.b16 %v314, %v312
    %v355 = vpack.c.b16 %v317, %v315
    %v356 = vpack.c.b16 %v318, %v316
    %v357 = vpack.c.b16 %v321, %v319
    %v358 = vpack.c.b16 %v322, %v320
    %v359 = vpack.c.b16 %v325, %v323
    %v360 = vpack.c.b16 %v326, %v324
    %v361 = vpack.c.b16 %v329, %v327
    %v362 = vpack.c.b16 %v330, %v328
    %395 = vmatpush.bf16.msra.mxu0 %v345
    %396 = vmatpush.bf16.msra.mxu0 %v343
    %397 = vmatpush.bf16.msra.mxu0 %v341
    %398 = vmatpush.bf16.msra.mxu0 %v339
    %399 = vmatpush.bf16.msra.mxu0 %v337
    %400 = vmatpush.bf16.msra.mxu0 %v335
    %401 = vmatpush.bf16.msra.mxu0 %v333
    %402 = vmatpush.bf16.msra.mxu0 %v331
    %403 = vmatmul.bf16.gmra.mxu0 %v201
    %v404 = vpop.f32.mrf.mxu0
    %v405 = vadd.f32 0.0, %v404
    %v406 = vpop.f32.mrf.mxu0
    %407 = vdwg.mxu0
    %408 = vmatpush.bf16.msra.mxu0 %v361
    %409 = vmatpush.bf16.msra.mxu0 %v359
    %410 = vmatpush.bf16.msra.mxu0 %v357
    %411 = vmatpush.bf16.msra.mxu0 %v355
    %412 = vmatpush.bf16.msra.mxu0 %v353
    %413 = vmatpush.bf16.msra.mxu0 %v351
    %414 = vmatpush.bf16.msra.mxu0 %v349
    %415 = vmatpush.bf16.msra.mxu0 %v347
    %416 = vmatmul.bf16.gmra.mxu0 %v202
    %v417 = vpop.f32.mrf.mxu0
    %v418 = vadd.f32 %v405, %v417
    %v419 = vpop.f32.mrf.mxu0
    %420 = vdwg.mxu0
    %421 = vmatpush.bf16.msra.mxu0 %v346
    %422 = vmatpush.bf16.msra.mxu0 %v344
    %423 = vmatpush.bf16.msra.mxu0 %v342
    %424 = vmatpush.bf16.msra.mxu0 %v340
    %425 = vmatpush.bf16.msra.mxu0 %v338
    %426 = vmatpush.bf16.msra.mxu0 %v336
    %427 = vmatpush.bf16.msra.mxu0 %v334
    %428 = vmatpush.bf16.msra.mxu0 %v332
    %429 = vmatmul.bf16.gmra.mxu0 %v201
    %v430 = vpop.f32.mrf.mxu0
    %v431 = vadd.f32 0.0, %v430
    %v432 = vpop.f32.mrf.mxu0
    %433 = vdwg.mxu0
    %434 = vmatpush.bf16.msra.mxu0 %v362
    %435 = vmatpush.bf16.msra.mxu0 %v360
    %436 = vmatpush.bf16.msra.mxu0 %v358
    %437 = vmatpush.bf16.msra.mxu0 %v356
    %438 = vmatpush.bf16.msra.mxu0 %v354
    %439 = vmatpush.bf16.msra.mxu0 %v352
    %440 = vmatpush.bf16.msra.mxu0 %v350
    %441 = vmatpush.bf16.msra.mxu0 %v348
    %442 = vmatmul.bf16.gmra.mxu0 %v202
    %v443 = vpop.f32.mrf.mxu0
    %v444 = vadd.f32 %v431, %v443
    %v445 = vpop.f32.mrf.mxu0
    %446 = vdwg.mxu0
    %v447 = vpack.c.bf16 %v444, %v418
    %v448 = vld [vmem:[%s4] sm:$0x3]
    %v450 = vperm.slane %v448, 0
    %v451 = vperm.slane %v448, 1
    %v454 = vpack.c.bf16 %v451, %v450
    %v456 = vunpack.c.l.b16 %v454
    %v457 = vunpack.c.h.b16 %v454
    %v458 = vpack.c.b16 %v456, %v456
    %v459 = vpack.c.b16 %v457, %v457
    %v461 = vpack.i.b16 %v458, %v458
    %v463 = vperm.slane %v461, 0
    %v465 = vpack.i.b16 %v459, %v459
    %v467 = vperm.slane %v465, 0
    %v468 = vunpack.c.l.bf16 %v447
    %v469 = vunpack.c.h.bf16 %v447
    %v470 = vunpack.c.l.bf16 %v463
    %v471 = vunpack.c.l.bf16 %v467
    %v472 = vadd.f32 %v468, %v470
    %v473 = vadd.f32 %v469, %v471
    %v474 = vpack.c.bf16 %v473, %v472
    %v475 = vunpack.c.l.bf16 %v474
    %v476 = vunpack.c.h.bf16 %v474
    %v477 = vmax.f32 %v475, 0.0
    %v478 = vmax.f32 %v476, 0.0
    %v479 = vpack.c.bf16 %v477, %v477
    %v480 = vpack.c.bf16 %v478, %v478
    %v481 = vld [vmem:[#allocation9] sm:$0xff]
    %v482 = vld [vmem:[#allocation9 + $0x8] sm:$0xff]
    %v483 = vld [vmem:[#allocation9 + $0x10] sm:$0xff]
    %v484 = vld [vmem:[#allocation9 + $0x18] sm:$0xff]
    %v485 = vld [vmem:[#allocation9 + $0x20] sm:$0xff]
    %v486 = vld [vmem:[#allocation9 + $0x28] sm:$0xff]
    %v487 = vld [vmem:[#allocation9 + $0x30] sm:$0xff]
    %v488 = vld [vmem:[#allocation9 + $0x38] sm:$0xff]
    %v489 = vld [vmem:[#allocation9 + $0x40] sm:$0xff]
    %v490 = vld [vmem:[#allocation9 + $0x48] sm:$0xff]
    %v491 = vld [vmem:[#allocation9 + $0x50] sm:$0xff]
    %v492 = vld [vmem:[#allocation9 + $0x58] sm:$0xff]
    %v493 = vld [vmem:[#allocation9 + $0x60] sm:$0xff]
    %v494 = vld [vmem:[#allocation9 + $0x68] sm:$0xff]
    %v495 = vld [vmem:[#allocation9 + $0x70] sm:$0xff]
    %v496 = vld [vmem:[#allocation9 + $0x78] sm:$0xff]
    %v497 = vld [vmem:[#allocation9 + $0x80] sm:$0xff]
    %v498 = vld [vmem:[#allocation9 + $0x88] sm:$0xff]
    %v499 = vld [vmem:[#allocation9 + $0x90] sm:$0xff]
    %v500 = vld [vmem:[#allocation9 + $0x98] sm:$0xff]
    %v501 = vld [vmem:[#allocation9 + $0xa0] sm:$0xff]
    %v502 = vld [vmem:[#allocation9 + $0xa8] sm:$0xff]
    %v503 = vld [vmem:[#allocation9 + $0xb0] sm:$0xff]
    %v504 = vld [vmem:[#allocation9 + $0xb8] sm:$0xff]
    %v505 = vld [vmem:[#allocation9 + $0xc0] sm:$0xff]
    %v506 = vld [vmem:[#allocation9 + $0xc8] sm:$0xff]
    %v507 = vld [vmem:[#allocation9 + $0xd0] sm:$0xff]
    %v508 = vld [vmem:[#allocation9 + $0xd8] sm:$0xff]
    %v509 = vld [vmem:[#allocation9 + $0xe0] sm:$0xff]
    %v510 = vld [vmem:[#allocation9 + $0xe8] sm:$0xff]
    %v511 = vld [vmem:[#allocation9 + $0xf0] sm:$0xff]
    %v512 = vld [vmem:[#allocation9 + $0xf8] sm:$0xff]
    %v545 = vunpack.c.l.b16 %v481
    %v546 = vunpack.c.h.b16 %v481
    %v547 = vunpack.c.l.b16 %v482
    %v548 = vunpack.c.h.b16 %v482
    %v549 = vunpack.c.l.b16 %v483
    %v550 = vunpack.c.h.b16 %v483
    %v551 = vunpack.c.l.b16 %v484
    %v552 = vunpack.c.h.b16 %v484
    %v553 = vunpack.c.l.b16 %v485
    %v554 = vunpack.c.h.b16 %v485
    %v555 = vunpack.c.l.b16 %v486
    %v556 = vunpack.c.h.b16 %v486
    %v557 = vunpack.c.l.b16 %v487
    %v558 = vunpack.c.h.b16 %v487
    %v559 = vunpack.c.l.b16 %v488
    %v560 = vunpack.c.h.b16 %v488
    %v561 = vunpack.c.l.b16 %v489
    %v562 = vunpack.c.h.b16 %v489
    %v563 = vunpack.c.l.b16 %v490
    %v564 = vunpack.c.h.b16 %v490
    %v565 = vunpack.c.l.b16 %v491
    %v566 = vunpack.c.h.b16 %v491
    %v567 = vunpack.c.l.b16 %v492
    %v568 = vunpack.c.h.b16 %v492
    %v569 = vunpack.c.l.b16 %v493
    %v570 = vunpack.c.h.b16 %v493
    %v571 = vunpack.c.l.b16 %v494
    %v572 = vunpack.c.h.b16 %v494
    %v573 = vunpack.c.l.b16 %v495
    %v574 = vunpack.c.h.b16 %v495
    %v575 = vunpack.c.l.b16 %v496
    %v576 = vunpack.c.h.b16 %v496
    %v577 = vunpack.c.l.b16 %v497
    %v578 = vunpack.c.h.b16 %v497
    %v579 = vunpack.c.l.b16 %v498
    %v580 = vunpack.c.h.b16 %v498
    %v581 = vunpack.c.l.b16 %v499
    %v582 = vunpack.c.h.b16 %v499
    %v583 = vunpack.c.l.b16 %v500
    %v584 = vunpack.c.h.b16 %v500
    %v585 = vunpack.c.l.b16 %v501
    %v586 = vunpack.c.h.b16 %v501
    %v587 = vunpack.c.l.b16 %v502
    %v588 = vunpack.c.h.b16 %v502
    %v589 = vunpack.c.l.b16 %v503
    %v590 = vunpack.c.h.b16 %v503
    %v591 = vunpack.c.l.b16 %v504
    %v592 = vunpack.c.h.b16 %v504
    %v593 = vunpack.c.l.b16 %v505
    %v594 = vunpack.c.h.b16 %v505
    %v595 = vunpack.c.l.b16 %v506
    %v596 = vunpack.c.h.b16 %v506
    %v597 = vunpack.c.l.b16 %v507
    %v598 = vunpack.c.h.b16 %v507
    %v599 = vunpack.c.l.b16 %v508
    %v600 = vunpack.c.h.b16 %v508
    %v601 = vunpack.c.l.b16 %v509
    %v602 = vunpack.c.h.b16 %v509
    %v603 = vunpack.c.l.b16 %v510
    %v604 = vunpack.c.h.b16 %v510
    %v605 = vunpack.c.l.b16 %v511
    %v606 = vunpack.c.h.b16 %v511
    %v607 = vunpack.c.l.b16 %v512
    %v608 = vunpack.c.h.b16 %v512
    %v609 = vpack.c.b16 %v547, %v545
    %v610 = vpack.c.b16 %v548, %v546
    %v611 = vpack.c.b16 %v551, %v549
    %v612 = vpack.c.b16 %v552, %v550
    %v613 = vpack.c.b16 %v555, %v553
    %v614 = vpack.c.b16 %v556, %v554
    %v615 = vpack.c.b16 %v559, %v557
    %v616 = vpack.c.b16 %v560, %v558
    %v617 = vpack.c.b16 %v563, %v561
    %v618 = vpack.c.b16 %v564, %v562
    %v619 = vpack.c.b16 %v567, %v565
    %v620 = vpack.c.b16 %v568, %v566
    %v621 = vpack.c.b16 %v571, %v569
    %v622 = vpack.c.b16 %v572, %v570
    %v623 = vpack.c.b16 %v575, %v573
    %v624 = vpack.c.b16 %v576, %v574
    %v625 = vpack.c.b16 %v579, %v577
    %v626 = vpack.c.b16 %v580, %v578
    %v627 = vpack.c.b16 %v583, %v581
    %v628 = vpack.c.b16 %v584, %v582
    %v629 = vpack.c.b16 %v587, %v585
    %v630 = vpack.c.b16 %v588, %v586
    %v631 = vpack.c.b16 %v591, %v589
    %v632 = vpack.c.b16 %v592, %v590
    %v633 = vpack.c.b16 %v595, %v593
    %v634 = vpack.c.b16 %v596, %v594
    %v635 = vpack.c.b16 %v599, %v597
    %v636 = vpack.c.b16 %v600, %v598
    %v637 = vpack.c.b16 %v603, %v601
    %v638 = vpack.c.b16 %v604, %v602
    %v639 = vpack.c.b16 %v607, %v605
    %v640 = vpack.c.b16 %v608, %v606
    %673 = vmatpush.bf16.msra.mxu0 %v623
    %674 = vmatpush.bf16.msra.mxu0 %v621
    %675 = vmatpush.bf16.msra.mxu0 %v619
    %676 = vmatpush.bf16.msra.mxu0 %v617
    %677 = vmatpush.bf16.msra.mxu0 %v615
    %678 = vmatpush.bf16.msra.mxu0 %v613
    %679 = vmatpush.bf16.msra.mxu0 %v611
    %680 = vmatpush.bf16.msra.mxu0 %v609
    %681 = vmatmul.bf16.gmra.mxu0 %v479
    %v682 = vpop.f32.mrf.mxu0
    %v683 = vadd.f32 0.0, %v682
    %v684 = vpop.f32.mrf.mxu0
    %685 = vdwg.mxu0
    %686 = vmatpush.bf16.msra.mxu0 %v639
    %687 = vmatpush.bf16.msra.mxu0 %v637
    %688 = vmatpush.bf16.msra.mxu0 %v635
    %689 = vmatpush.bf16.msra.mxu0 %v633
    %690 = vmatpush.bf16.msra.mxu0 %v631
    %691 = vmatpush.bf16.msra.mxu0 %v629
    %692 = vmatpush.bf16.msra.mxu0 %v627
    %693 = vmatpush.bf16.msra.mxu0 %v625
    %694 = vmatmul.bf16.gmra.mxu0 %v480
    %v695 = vpop.f32.mrf.mxu0
    %v696 = vadd.f32 %v683, %v695
    %v697 = vpop.f32.mrf.mxu0
    %698 = vdwg.mxu0
    %699 = vmatpush.bf16.msra.mxu0 %v624
    %700 = vmatpush.bf16.msra.mxu0 %v622
    %701 = vmatpush.bf16.msra.mxu0 %v620
    %702 = vmatpush.bf16.msra.mxu0 %v618
    %703 = vmatpush.bf16.msra.mxu0 %v616
    %704 = vmatpush.bf16.msra.mxu0 %v614
    %705 = vmatpush.bf16.msra.mxu0 %v612
    %706 = vmatpush.bf16.msra.mxu0 %v610
    %707 = vmatmul.bf16.gmra.mxu0 %v479
    %v708 = vpop.f32.mrf.mxu0
    %v709 = vadd.f32 0.0, %v708
    %v710 = vpop.f32.mrf.mxu0
    %711 = vdwg.mxu0
    %712 = vmatpush.bf16.msra.mxu0 %v640
    %713 = vmatpush.bf16.msra.mxu0 %v638
    %714 = vmatpush.bf16.msra.mxu0 %v636
    %715 = vmatpush.bf16.msra.mxu0 %v634
    %716 = vmatpush.bf16.msra.mxu0 %v632
    %717 = vmatpush.bf16.msra.mxu0 %v630
    %718 = vmatpush.bf16.msra.mxu0 %v628
    %719 = vmatpush.bf16.msra.mxu0 %v626
    %720 = vmatmul.bf16.gmra.mxu0 %v480
    %v721 = vpop.f32.mrf.mxu0
    %v722 = vadd.f32 %v709, %v721
    %v723 = vpop.f32.mrf.mxu0
    %724 = vdwg.mxu0
    %v725 = vpack.c.bf16 %v722, %v696
    %v726 = vld [vmem:[%s6] sm:$0x3]
    %v728 = vperm.slane %v726, 0
    %v729 = vperm.slane %v726, 1
    %v732 = vpack.c.bf16 %v729, %v728
    %v734 = vunpack.c.l.b16 %v732
    %v735 = vunpack.c.h.b16 %v732
    %v736 = vpack.c.b16 %v734, %v734
    %v737 = vpack.c.b16 %v735, %v735
    %v739 = vpack.i.b16 %v736, %v736
    %v741 = vperm.slane %v739, 0
    %v743 = vpack.i.b16 %v737, %v737
    %v745 = vperm.slane %v743, 0
    %v746 = vunpack.c.l.bf16 %v725
    %v747 = vunpack.c.h.bf16 %v725
    %v748 = vunpack.c.l.bf16 %v741
    %v749 = vunpack.c.l.bf16 %v745
    %v750 = vadd.f32 %v746, %v748
    %v751 = vadd.f32 %v747, %v749
    %v752 = vpack.c.bf16 %v751, %v750
    %v753 = vunpack.c.l.bf16 %v752
    %v754 = vunpack.c.h.bf16 %v752
    %v755 = vmax.f32 %v753, 0.0
    %v756 = vmax.f32 %v754, 0.0
    %v757 = vpack.c.bf16 %v755, %v755
    %v758 = vpack.c.bf16 %v756, %v756
    %v759 = vld [vmem:[#allocation10] sm:$0xf]
    %v760 = vld [vmem:[#allocation10 + $0x4] sm:$0xf]
    %v761 = vld [vmem:[#allocation10 + $0x8] sm:$0xf]
    %v762 = vld [vmem:[#allocation10 + $0xc] sm:$0xf]
    %v763 = vld [vmem:[#allocation10 + $0x10] sm:$0xf]
    %v764 = vld [vmem:[#allocation10 + $0x14] sm:$0xf]
    %v765 = vld [vmem:[#allocation10 + $0x18] sm:$0xf]
    %v766 = vld [vmem:[#allocation10 + $0x1c] sm:$0xf]
    %v767 = vld [vmem:[#allocation10 + $0x20] sm:$0xf]
    %v768 = vld [vmem:[#allocation10 + $0x24] sm:$0xf]
    %v769 = vld [vmem:[#allocation10 + $0x28] sm:$0xf]
    %v770 = vld [vmem:[#allocation10 + $0x2c] sm:$0xf]
    %v771 = vld [vmem:[#allocation10 + $0x30] sm:$0xf]
    %v772 = vld [vmem:[#allocation10 + $0x34] sm:$0xf]
    %v773 = vld [vmem:[#allocation10 + $0x38] sm:$0xf]
    %v774 = vld [vmem:[#allocation10 + $0x3c] sm:$0xf]
    %v775 = vld [vmem:[#allocation10 + $0x40] sm:$0xf]
    %v776 = vld [vmem:[#allocation10 + $0x44] sm:$0xf]
    %v777 = vld [vmem:[#allocation10 + $0x48] sm:$0xf]
    %v778 = vld [vmem:[#allocation10 + $0x4c] sm:$0xf]
    %v779 = vld [vmem:[#allocation10 + $0x50] sm:$0xf]
    %v780 = vld [vmem:[#allocation10 + $0x54] sm:$0xf]
    %v781 = vld [vmem:[#allocation10 + $0x58] sm:$0xf]
    %v782 = vld [vmem:[#allocation10 + $0x5c] sm:$0xf]
    %v783 = vld [vmem:[#allocation10 + $0x60] sm:$0xf]
    %v784 = vld [vmem:[#allocation10 + $0x64] sm:$0xf]
    %v785 = vld [vmem:[#allocation10 + $0x68] sm:$0xf]
    %v786 = vld [vmem:[#allocation10 + $0x6c] sm:$0xf]
    %v787 = vld [vmem:[#allocation10 + $0x70] sm:$0xf]
    %v788 = vld [vmem:[#allocation10 + $0x74] sm:$0xf]
    %v789 = vld [vmem:[#allocation10 + $0x78] sm:$0xf]
    %v790 = vld [vmem:[#allocation10 + $0x7c] sm:$0xf]
    %v823 = vunpack.c.l.b16 %v759
    %v824 = vunpack.c.l.b16 %v760
    %v825 = vunpack.c.l.b16 %v761
    %v826 = vunpack.c.l.b16 %v762
    %v827 = vunpack.c.l.b16 %v763
    %v828 = vunpack.c.l.b16 %v764
    %v829 = vunpack.c.l.b16 %v765
    %v830 = vunpack.c.l.b16 %v766
    %v831 = vunpack.c.l.b16 %v767
    %v832 = vunpack.c.l.b16 %v768
    %v833 = vunpack.c.l.b16 %v769
    %v834 = vunpack.c.l.b16 %v770
    %v835 = vunpack.c.l.b16 %v771
    %v836 = vunpack.c.l.b16 %v772
    %v837 = vunpack.c.l.b16 %v773
    %v838 = vunpack.c.l.b16 %v774
    %v839 = vunpack.c.l.b16 %v775
    %v840 = vunpack.c.l.b16 %v776
    %v841 = vunpack.c.l.b16 %v777
    %v842 = vunpack.c.l.b16 %v778
    %v843 = vunpack.c.l.b16 %v779
    %v844 = vunpack.c.l.b16 %v780
    %v845 = vunpack.c.l.b16 %v781
    %v846 = vunpack.c.l.b16 %v782
    %v847 = vunpack.c.l.b16 %v783
    %v848 = vunpack.c.l.b16 %v784
    %v849 = vunpack.c.l.b16 %v785
    %v850 = vunpack.c.l.b16 %v786
    %v851 = vunpack.c.l.b16 %v787
    %v852 = vunpack.c.l.b16 %v788
    %v853 = vunpack.c.l.b16 %v789
    %v854 = vunpack.c.l.b16 %v790
    %v855 = vpack.c.b16 %v824, %v823
    %v856 = vpack.c.b16 %v826, %v825
    %v857 = vpack.c.b16 %v828, %v827
    %v858 = vpack.c.b16 %v830, %v829
    %v859 = vpack.c.b16 %v832, %v831
    %v860 = vpack.c.b16 %v834, %v833
    %v861 = vpack.c.b16 %v836, %v835
    %v862 = vpack.c.b16 %v838, %v837
    %v863 = vpack.c.b16 %v840, %v839
    %v864 = vpack.c.b16 %v842, %v841
    %v865 = vpack.c.b16 %v844, %v843
    %v866 = vpack.c.b16 %v846, %v845
    %v867 = vpack.c.b16 %v848, %v847
    %v868 = vpack.c.b16 %v850, %v849
    %v869 = vpack.c.b16 %v852, %v851
    %v870 = vpack.c.b16 %v854, %v853
    %887 = vmatpush.bf16.msra.mxu0 %v862
    %888 = vmatpush.bf16.msra.mxu0 %v861
    %889 = vmatpush.bf16.msra.mxu0 %v860
    %890 = vmatpush.bf16.msra.mxu0 %v859
    %891 = vmatpush.bf16.msra.mxu0 %v858
    %892 = vmatpush.bf16.msra.mxu0 %v857
    %893 = vmatpush.bf16.msra.mxu0 %v856
    %894 = vmatpush.bf16.msra.mxu0 %v855
    %895 = vmatmul.bf16.gmra.mxu0 %v757
    %v896 = vpop.f32.mrf.mxu0
    %v897 = vadd.f32 0.0, %v896
    %v898 = vpop.f32.mrf.mxu0
    %899 = vdwg.mxu0
    %900 = vmatpush.bf16.msra.mxu0 %v870
    %901 = vmatpush.bf16.msra.mxu0 %v869
    %902 = vmatpush.bf16.msra.mxu0 %v868
    %903 = vmatpush.bf16.msra.mxu0 %v867
    %904 = vmatpush.bf16.msra.mxu0 %v866
    %905 = vmatpush.bf16.msra.mxu0 %v865
    %906 = vmatpush.bf16.msra.mxu0 %v864
    %907 = vmatpush.bf16.msra.mxu0 %v863
    %908 = vmatmul.bf16.gmra.mxu0 %v758
    %v909 = vpop.f32.mrf.mxu0
    %v910 = vadd.f32 %v897, %v909
    %v911 = vpop.f32.mrf.mxu0
    %912 = vdwg.mxu0
    %v913 = vpack.c.bf16 %v910, %v910
    %v914 = vld [vmem:[%s8] sm:$0x1]
    %v915 = vpack.c.bf16 %v914, %v914
    %v917 = vpack.i.b16 %v915, %v915
    %v919 = vperm.slane %v917, 0
    %v920 = vunpack.c.l.bf16 %v913
    %v921 = vunpack.c.l.bf16 %v919
    %v922 = vadd.f32 %v920, %v921
    %v923 = vpack.c.bf16 %v922, %v922
    %924 = vst [vmem:[%s9] sm:$0x1] %v923
    // Predicated region
    $region62: #{quantile_forward.1} parent=1 // pred_check
      _
    $region63: #{quantile_forward.1} parent=1 // pred_check_branch
      %926 = sbr.rel (0) target = $region65
    $region64: #{quantile_forward.1} parent=1 // pred_region
      _
    $region65: #{quantile_forward.1} parent=1 // pred_fallthru
      _
    // Predicated region
    $region66: #{quantile_forward.1} parent=1 // pred_check
      _
    $region67: #{quantile_forward.1} parent=1 // pred_check_branch
      %928 = sbr.rel (0) target = $region69
    $region68: #{quantile_forward.1} parent=1 // pred_region
      _
    $region69: #{quantile_forward.1} parent=1 // pred_fallthru
      _
    %929 = vsyncpa [#allocation3], 1
    %930 = vsyncpa [#allocation5], 1
    %931 = vsyncpa [#allocation8], 1
    %932 = vsyncpa [#allocation11], 1

</llo_original>
